<compile_context>
chip_gen: v7x
topology: tpu7x:2x2x1
jax: 0.10.0
libtpu: 0.0.40
codegen_flags: <defaults>
</compile_context>

<pallas_src>
import functools

import numpy as np
import jax
import jax.numpy as jnp
from jax import lax
from jax.experimental import pallas as pl
from jax.experimental.pallas import tpu as pltpu  # noqa: F401  (no grid / TPU params needed at this size)

# ---------------- problem sizes (small, consistent with the module) ----------------
B, N, T, DIM = 2, 1, 8, 32
NUM_HEADS = 4
HEAD_DIM = DIM // NUM_HEADS
MLP_RATIO = 4.0
HIDDEN = int(DIM * MLP_RATIO)
SCALE = HEAD_DIM ** (-0.5)          # qk_scale=None -> head_dim ** -0.5
EPS = 1e-5                          # nn.LayerNorm default eps
INV_SQRT2 = 0.7071067811865476


# ---------------- numerics helpers (kernel-safe: mul/add/clip/exp/rsqrt only) ----------------
def _erf_f32(x):
    # f32 rational erf approximation (same form XLA uses); Estrin evaluation for short
    # dependency chains. nn.GELU() is exact-GELU.
    a0, a1, a2, a3, a4 = (0.00022905065861350646, 0.0034082910107109506,
                          0.050955695062380861, 0.18520832239976145, 1.128379143519084)
    b0, b1, b2, b3, b4, b5, b6 = (-1.1791602954361697e-07, 2.3547966471313185e-05,
                                  0.0010179625278914885, 0.014070470171167667,
                                  0.11098505178285362, 0.49746925110067538, 1.0)
    x = jnp.clip(x, -4.0, 4.0)
    t = x * x
    t2 = t * t
    t4 = t2 * t2
    # numerator: degree-4 polynomial in t (Estrin)
    p = (a0 * t2 + (a1 * t + a2)) * t2 + (a3 * t + a4)
    # denominator: degree-6 polynomial in t (Estrin)
    d_lo = (b3 * t + b4) * t2 + (b5 * t + b6)
    d_hi = b0 * t2 + (b1 * t + b2)
    q = d_hi * t4 + d_lo
    return (x * p) / q


def _gelu_exact(x):
    return 0.5 * x * (1.0 + _erf_f32(x * INV_SQRT2))


def _layernorm(z, g, b):
    mu = jnp.mean(z, axis=-1, keepdims=True)
    var = jnp.mean((z - mu) ** 2, axis=-1, keepdims=True)
    return (z - mu) * lax.rsqrt(var + EPS) * g + b


# ---------------- fused Pallas kernel: single invocation, all batches & heads at once ----------------
def _decoder_block_kernel(x_ref, vec_ref, wqkv_ref, wp_ref, w1_ref, w2_ref,
                          hm_ref, sm_ref, o_ref):
    f32, bf16 = jnp.float32, jnp.bfloat16
    rows, dim = x_ref.shape                      # rows = B*N*T
    hidden = w1_ref.shape[1]
    num_heads = hm_ref.shape[0] // rows

    x = x_ref[...]                               # (rows, dim) f32

    gnv = vec_ref[0:1, 0:dim]                    # norm_v weight / bias
    bnv = vec_ref[1:2, 0:dim]
    gn2 = vec_ref[2:3, 0:dim]                    # norm2 weight / bias
    bn2 = vec_ref[3:4, 0:dim]
    bp = vec_ref[4:5, 0:dim]                     # proj bias
    b2 = vec_ref[5:6, 0:dim]                     # fc2 bias
    b1 = vec_ref[6:7, 0:hidden]                  # fc1 bias

    # ---- v + attn(norm_v(v)) ----
    y = _layernorm(x, gnv, bnv)
    # fused QKV projection (softmax scale pre-folded into the Q columns); bf16 MXU, f32 acc
    qkv = jnp.dot(y.astype(bf16), wqkv_ref[...], preferred_element_type=f32)   # (rows, 3*dim)

    hm = hm_ref[...]                             # (H*rows, dim) 0/1 block-diagonal head mask
    q = qkv[:, 0:dim]                            # f32
    k = qkv[:, dim:2 * dim].astype(bf16)
    v = qkv[:, 2 * dim:3 * dim].astype(bf16)

    # row-packed block-diagonal Q: row block h holds Q with only head h's columns kept
    q_tiled = jnp.concatenate([q] * num_heads, axis=0)          # (H*rows, dim)
    qbd = (q_tiled * hm).astype(bf16)

    # all-head scores in one matmul; sm holds the additive cross-batch kill mask
    s = lax.dot_general(qbd, k, (((1,), (1,)), ((), ())),
                        preferred_element_type=f32) + sm_ref[...]      # (H*rows, rows)

    # softmax over keys, once for all heads (f32 statistics, EUP reciprocal)
    s = s - jnp.max(s, axis=-1, keepdims=True)
    p = jnp.exp(s)
    p = p * pl.reciprocal(jnp.sum(p, axis=-1, keepdims=True), approx=True)

    # all-head PV in one matmul; then gather each head's own columns (block-diag extract)
    opv = jnp.dot(p.astype(bf16), v, preferred_element_type=f32)       # (H*rows, dim)
    opv = opv * hm
    out_c = opv[0:rows]
    for h in range(1, num_heads):                # static unroll; sublane-aligned slices
        out_c = out_c + opv[h * rows:(h + 1) * rows]                   # (rows, dim)

    attn = jnp.dot(out_c.astype(bf16), wp_ref[...], preferred_element_type=f32)
    x1 = x + attn + bp

    # ---- x1 + mlp(norm2(x1)) ----
    y2 = _layernorm(x1, gn2, bn2)
    hdn = jnp.dot(y2.astype(bf16), w1_ref[...], preferred_element_type=f32) + b1
    hdn = _gelu_exact(hdn)
    mlp = jnp.dot(hdn.astype(bf16), w2_ref[...], preferred_element_type=f32) + b2

    o_ref[...] = (x1 + mlp).astype(o_ref.dtype)


# ---------------- parameter / mask packing (done ONCE at init, outside the jitted forward) ----------------
def pack_params(raw, *, num_heads, batch, seq):
    (gnv, bnv, wq, wk, wv, wp, bp, gn2, bn2, w1, b1, w2, b2) = raw
    dim = wq.shape[0]
    hidden = w1.shape[1]
    head_dim = dim // num_heads
    rows = batch * seq
    assert dim <= 128 and hidden <= 128, "vector-param slab packing assumes dim, hidden <= 128"
    scale = head_dim ** (-0.5)

    # fused QKV weight with the softmax scale folded into the Q columns
    wqkv = jnp.concatenate([wq * scale, wk, wv], axis=1).astype(jnp.bfloat16)   # (dim, 3*dim)
    wpb = wp.astype(jnp.bfloat16)                                               # (dim, dim)
    w1b = w1.astype(jnp.bfloat16)
    w2b = w2.astype(jnp.bfloat16)

    # all 1-D params in one (7, 128) f32 slab
    vecs = np.zeros((7, 128), np.float32)
    vecs[0, :dim] = np.asarray(gnv)
    vecs[1, :dim] = np.asarray(bnv)
    vecs[2, :dim] = np.asarray(gn2)
    vecs[3, :dim] = np.asarray(bn2)
    vecs[4, :dim] = np.asarray(bp)
    vecs[5, :dim] = np.asarray(b2)
    vecs[6, :hidden] = np.asarray(b1)
    vecs = jnp.asarray(vecs)

    # 0/1 block-diagonal head mask: row block h keeps only head h's columns
    row_head = np.arange(num_heads * rows) // rows                 # (H*rows,)
    col_head = np.arange(dim) // head_dim                          # (dim,)
    hm = (row_head[:, None] == col_head[None, :]).astype(np.float32)
    hm = jnp.asarray(hm)                                           # (H*rows, dim)

    # additive cross-batch mask (batch folded into the row axis), tiled over heads
    rbatch = np.arange(rows) // seq
    neg = np.where(rbatch[:, None] == rbatch[None, :], 0.0, -1e30).astype(np.float32)
    sm = jnp.asarray(np.tile(neg, (num_heads, 1)))                 # (H*rows, rows)

    return (vecs, wqkv, wpb, w1b, w2b, hm, sm)


# ---------------- wrapper (steady-state path: reshape + one pallas_call only) ----------------
@jax.jit
def decoder_block_forward(x, packed):
    vecs, wqkv, wpb, w1b, w2b, hm, sm = packed
    Bx, Nx, Tx, Dx = x.shape
    x2d = x.reshape(Bx * Nx * Tx, Dx)
    out = pl.pallas_call(
        _decoder_block_kernel,
        out_shape=jax.ShapeDtypeStruct((Bx * Nx * Tx, Dx), x.dtype),
    )(x2d, vecs, wqkv, wpb, w1b, w2b, hm, sm)
    return out.reshape(Bx, Nx, Tx, Dx)


# ---------------- pure-JAX f32 reference (mirrors the PyTorch forward) ----------------
def reference(x, raw):
    (gnv, bnv, wq, wk, wv, wp, bp, gn2, bn2, w1, b1, w2, b2) = raw
    Bx, Nx, Tx, Dx = x.shape
    y = _layernorm(x, gnv, bnv)
    q, k, v = y @ wq, y @ wk, y @ wv

    def split(t):
        return t.reshape(Bx * Nx, Tx, NUM_HEADS, HEAD_DIM).transpose(0, 2, 1, 3)

    qh, kh, vh = split(q), split(k), split(v)
    attn = jnp.einsum('bhtd,bhsd->bhts', qh, kh) * SCALE
    attn = jax.nn.softmax(attn, axis=-1)
    o = jnp.einsum('bhts,bhsd->bhtd', attn, vh)
    o = o.transpose(0, 2, 1, 3).reshape(Bx, 1, Tx, Dx)
    o = o @ wp + bp
    x1 = x + o
    y2 = _layernorm(x1, gn2, bn2)
    hdn = jax.nn.gelu(y2 @ w1 + b1, approximate=False)     # true erf-GELU (nn.GELU default)
    return x1 + hdn @ w2 + b2


if __name__ == "__main__":
    key = jax.random.PRNGKey(0)
    ks = jax.random.split(key, 16)
    f32 = jnp.float32

    def lin_w(k, fan_in, fan_out):      # stored pre-transposed: (in, out), so y = x @ W
        return jax.random.normal(k, (fan_in, fan_out), f32) * 0.02

    # norm_q exists in __init__ but is never used in forward -> not materialized.
    gnv = 1.0 + 0.1 * jax.random.normal(ks[0], (DIM,), f32)      # norm_v.weight
    bnv = 0.1 * jax.random.normal(ks[1], (DIM,), f32)            # norm_v.bias
    wq = lin_w(ks[2], DIM, DIM)                                  # q_map (bias=False)
    wk = lin_w(ks[3], DIM, DIM)                                  # k_map (bias=False)
    wv = lin_w(ks[4], DIM, DIM)                                  # v_map (bias=False)
    wp = lin_w(ks[5], DIM, DIM)                                  # proj.weight^T
    bp = 0.02 * jax.random.normal(ks[6], (DIM,), f32)            # proj.bias
    gn2 = 1.0 + 0.1 * jax.random.normal(ks[7], (DIM,), f32)      # norm2.weight
    bn2 = 0.1 * jax.random.normal(ks[8], (DIM,), f32)            # norm2.bias
    w1 = lin_w(ks[9], DIM, HIDDEN)                               # mlp.fc1.weight^T
    b1 = 0.02 * jax.random.normal(ks[10], (HIDDEN,), f32)        # mlp.fc1.bias
    w2 = lin_w(ks[11], HIDDEN, DIM)                              # mlp.fc2.weight^T
    b2 = 0.02 * jax.random.normal(ks[12], (DIM,), f32)           # mlp.fc2.bias
    params = (gnv, bnv, wq, wk, wv, wp, bp, gn2, bn2, w1, b1, w2, b2)

    x = jax.random.normal(ks[13], (B, N, T, DIM), f32)

    # one-time packing (weights, bias slab, head/cross-batch masks) -- NOT on the per-call path
    packed = pack_params(params, num_heads=NUM_HEADS, batch=B * N, seq=T)
    packed = jax.tree_util.tree_map(jax.block_until_ready, packed)

    out = jax.block_until_ready(decoder_block_forward(x, packed))
    ref = reference(x, params)
    # kernel uses bf16 MXU operands (f32 accumulation) and an approx softmax reciprocal,
    # reference is pure f32 with true erf-GELU -> 5e-3 tolerance on O(1) outputs.
    np.testing.assert_allclose(np.asarray(out), np.asarray(ref), rtol=5e-3, atol=5e-3)
    print("KERNEL_OK")
</pallas_src>

<mosaic_0001>
module attributes {stable_mosaic.version = 11 : i64} {
  func.func @_decoder_block_kernel(%arg0: memref<16x32xf32, #tpu.memory_space<vmem>>, %arg1: memref<7x128xf32, #tpu.memory_space<vmem>>, %arg2: memref<32x96xbf16, #tpu.memory_space<vmem>>, %arg3: memref<32x32xbf16, #tpu.memory_space<vmem>>, %arg4: memref<32x128xbf16, #tpu.memory_space<vmem>>, %arg5: memref<128x32xbf16, #tpu.memory_space<vmem>>, %arg6: memref<64x32xf32, #tpu.memory_space<vmem>>, %arg7: memref<64x16xf32, #tpu.memory_space<vmem>>, %arg8: memref<16x32xf32, #tpu.memory_space<vmem>>) attributes {dimension_semantics = [], scalar_prefetch = 0 : i64, scratch_operands = 0 : i64, tpu.core_type = #tpu.core_type<tc>} {
    %c0 = arith.constant 0 : index
    %c0_0 = arith.constant 0 : index
    %0 = vector.load %arg0[%c0, %c0_0] : memref<16x32xf32, #tpu.memory_space<vmem>>, vector<16x32xf32>
    %c0_1 = arith.constant 0 : index
    %c0_2 = arith.constant 0 : index
    %1 = vector.load %arg1[%c0_1, %c0_2] : memref<7x128xf32, #tpu.memory_space<vmem>>, vector<1x32xf32>
    %c1 = arith.constant 1 : index
    %c0_3 = arith.constant 0 : index
    %2 = vector.load %arg1[%c1, %c0_3] : memref<7x128xf32, #tpu.memory_space<vmem>>, vector<1x32xf32>
    %c2 = arith.constant 2 : index
    %c0_4 = arith.constant 0 : index
    %3 = vector.load %arg1[%c2, %c0_4] : memref<7x128xf32, #tpu.memory_space<vmem>>, vector<1x32xf32>
    %c3 = arith.constant 3 : index
    %c0_5 = arith.constant 0 : index
    %4 = vector.load %arg1[%c3, %c0_5] : memref<7x128xf32, #tpu.memory_space<vmem>>, vector<1x32xf32>
    %c4 = arith.constant 4 : index
    %c0_6 = arith.constant 0 : index
    %5 = vector.load %arg1[%c4, %c0_6] : memref<7x128xf32, #tpu.memory_space<vmem>>, vector<1x32xf32>
    %c5 = arith.constant 5 : index
    %c0_7 = arith.constant 0 : index
    %6 = vector.load %arg1[%c5, %c0_7] : memref<7x128xf32, #tpu.memory_space<vmem>>, vector<1x32xf32>
    %c6 = arith.constant 6 : index
    %c0_8 = arith.constant 0 : index
    %7 = vector.load %arg1[%c6, %c0_8] : memref<7x128xf32, #tpu.memory_space<vmem>>, vector<1x128xf32>
    %cst = arith.constant dense<0.000000e+00> : vector<16xf32>
    %8 = vector.multi_reduction <add>, %0, %cst [1] : vector<16x32xf32> to vector<16xf32>
    %9 = vector.shape_cast %8 : vector<16xf32> to vector<16x1xf32>
    %cst_9 = arith.constant 3.200000e+01 : f32
    %10 = vector.broadcast %cst_9 : f32 to vector<16x1xf32>
    %11 = arith.divf %9, %10 : vector<16x1xf32>
    %12 = vector.broadcast %11 : vector<16x1xf32> to vector<16x32xf32>
    %13 = arith.subf %0, %12 : vector<16x32xf32>
    %14 = arith.mulf %13, %13 : vector<16x32xf32>
    %cst_10 = arith.constant dense<0.000000e+00> : vector<16xf32>
    %15 = vector.multi_reduction <add>, %14, %cst_10 [1] : vector<16x32xf32> to vector<16xf32>
    %16 = vector.shape_cast %15 : vector<16xf32> to vector<16x1xf32>
    %cst_11 = arith.constant 3.200000e+01 : f32
    %17 = vector.broadcast %cst_11 : f32 to vector<16x1xf32>
    %18 = arith.divf %16, %17 : vector<16x1xf32>
    %19 = vector.broadcast %11 : vector<16x1xf32> to vector<16x32xf32>
    %20 = arith.subf %0, %19 : vector<16x32xf32>
    %cst_12 = arith.constant 9.99999974E-6 : f32
    %21 = vector.broadcast %cst_12 : f32 to vector<16x1xf32>
    %22 = arith.addf %18, %21 : vector<16x1xf32>
    %23 = math.rsqrt %22 : vector<16x1xf32>
    %24 = vector.broadcast %23 : vector<16x1xf32> to vector<16x32xf32>
    %25 = arith.mulf %20, %24 : vector<16x32xf32>
    %26 = vector.broadcast %1 : vector<1x32xf32> to vector<16x32xf32>
    %27 = arith.mulf %25, %26 : vector<16x32xf32>
    %28 = vector.broadcast %2 : vector<1x32xf32> to vector<16x32xf32>
    %29 = arith.addf %27, %28 : vector<16x32xf32>
    %30 = arith.truncf %29 : vector<16x32xf32> to vector<16x32xbf16>
    %c0_13 = arith.constant 0 : index
    %c0_14 = arith.constant 0 : index
    %31 = vector.load %arg2[%c0_13, %c0_14] : memref<32x96xbf16, #tpu.memory_space<vmem>>, vector<32x96xbf16>
    %cst_15 = arith.constant dense<0.000000e+00> : vector<16x96xf32>
    %32 = tpu.matmul %30, %31, %cst_15 {dimension_numbers = #tpu.dot_dimension_numbers<[1], [0], [0], [1], [0, 0, 1, 1], [], []>} : vector<16x32xbf16>, vector<32x96xbf16>, vector<16x96xf32> -> vector<16x96xf32>
    %c0_16 = arith.constant 0 : index
    %c0_17 = arith.constant 0 : index
    %33 = vector.load %arg6[%c0_16, %c0_17] : memref<64x32xf32, #tpu.memory_space<vmem>>, vector<64x32xf32>
    %34 = vector.extract_strided_slice %32 {offsets = [0, 0], sizes = [16, 32], strides = [1, 1]} : vector<16x96xf32> to vector<16x32xf32>
    %35 = vector.extract_strided_slice %32 {offsets = [0, 32], sizes = [16, 32], strides = [1, 1]} : vector<16x96xf32> to vector<16x32xf32>
    %36 = arith.truncf %35 : vector<16x32xf32> to vector<16x32xbf16>
    %37 = vector.extract_strided_slice %32 {offsets = [0, 64], sizes = [16, 32], strides = [1, 1]} : vector<16x96xf32> to vector<16x32xf32>
    %38 = arith.truncf %37 : vector<16x32xf32> to vector<16x32xbf16>
    %39 = tpu.concatenate %34, %34, %34, %34 in 0 : vector<16x32xf32>, vector<16x32xf32>, vector<16x32xf32>, vector<16x32xf32> -> vector<64x32xf32>
    %40 = arith.mulf %39, %33 : vector<64x32xf32>
    %41 = arith.truncf %40 : vector<64x32xf32> to vector<64x32xbf16>
    %cst_18 = arith.constant dense<0.000000e+00> : vector<64x16xf32>
    %42 = tpu.matmul %41, %36, %cst_18 {dimension_numbers = #tpu.dot_dimension_numbers<[1], [1], [0], [0], [0, 0, 1, 0], [], []>} : vector<64x32xbf16>, vector<16x32xbf16>, vector<64x16xf32> -> vector<64x16xf32>
    %c0_19 = arith.constant 0 : index
    %c0_20 = arith.constant 0 : index
    %43 = vector.load %arg7[%c0_19, %c0_20] : memref<64x16xf32, #tpu.memory_space<vmem>>, vector<64x16xf32>
    %44 = arith.addf %42, %43 : vector<64x16xf32>
    %cst_21 = arith.constant dense<0xFF800000> : vector<64xf32>
    %45 = vector.multi_reduction <maximumf>, %44, %cst_21 [1] : vector<64x16xf32> to vector<64xf32>
    %46 = vector.shape_cast %45 : vector<64xf32> to vector<64x1xf32>
    %47 = vector.broadcast %46 : vector<64x1xf32> to vector<64x16xf32>
    %48 = arith.subf %44, %47 : vector<64x16xf32>
    %49 = math.exp %48 : vector<64x16xf32>
    %cst_22 = arith.constant dense<0.000000e+00> : vector<64xf32>
    %50 = vector.multi_reduction <add>, %49, %cst_22 [1] : vector<64x16xf32> to vector<64xf32>
    %51 = vector.shape_cast %50 : vector<64xf32> to vector<64x1xf32>
    %52 = tpu.reciprocal %51 {approx = true} : vector<64x1xf32> -> vector<64x1xf32>
    %53 = vector.broadcast %52 : vector<64x1xf32> to vector<64x16xf32>
    %54 = arith.mulf %49, %53 : vector<64x16xf32>
    %55 = arith.truncf %54 : vector<64x16xf32> to vector<64x16xbf16>
    %cst_23 = arith.constant dense<0.000000e+00> : vector<64x32xf32>
    %56 = tpu.matmul %55, %38, %cst_23 {dimension_numbers = #tpu.dot_dimension_numbers<[1], [0], [0], [1], [0, 0, 1, 1], [], []>} : vector<64x16xbf16>, vector<16x32xbf16>, vector<64x32xf32> -> vector<64x32xf32>
    %57 = arith.mulf %56, %33 : vector<64x32xf32>
    %58 = vector.extract_strided_slice %57 {offsets = [0, 0], sizes = [16, 32], strides = [1, 1]} : vector<64x32xf32> to vector<16x32xf32>
    %59 = vector.extract_strided_slice %57 {offsets = [16, 0], sizes = [16, 32], strides = [1, 1]} : vector<64x32xf32> to vector<16x32xf32>
    %60 = arith.addf %58, %59 : vector<16x32xf32>
    %61 = vector.extract_strided_slice %57 {offsets = [32, 0], sizes = [16, 32], strides = [1, 1]} : vector<64x32xf32> to vector<16x32xf32>
    %62 = arith.addf %60, %61 : vector<16x32xf32>
    %63 = vector.extract_strided_slice %57 {offsets = [48, 0], sizes = [16, 32], strides = [1, 1]} : vector<64x32xf32> to vector<16x32xf32>
    %64 = arith.addf %62, %63 : vector<16x32xf32>
    %65 = arith.truncf %64 : vector<16x32xf32> to vector<16x32xbf16>
    %c0_24 = arith.constant 0 : index
    %c0_25 = arith.constant 0 : index
    %66 = vector.load %arg3[%c0_24, %c0_25] : memref<32x32xbf16, #tpu.memory_space<vmem>>, vector<32x32xbf16>
    %cst_26 = arith.constant dense<0.000000e+00> : vector<16x32xf32>
    %67 = tpu.matmul %65, %66, %cst_26 {dimension_numbers = #tpu.dot_dimension_numbers<[1], [0], [0], [1], [0, 0, 1, 1], [], []>} : vector<16x32xbf16>, vector<32x32xbf16>, vector<16x32xf32> -> vector<16x32xf32>
    %68 = arith.addf %0, %67 : vector<16x32xf32>
    %69 = vector.broadcast %5 : vector<1x32xf32> to vector<16x32xf32>
    %70 = arith.addf %68, %69 : vector<16x32xf32>
    %cst_27 = arith.constant dense<0.000000e+00> : vector<16xf32>
    %71 = vector.multi_reduction <add>, %70, %cst_27 [1] : vector<16x32xf32> to vector<16xf32>
    %72 = vector.shape_cast %71 : vector<16xf32> to vector<16x1xf32>
    %cst_28 = arith.constant 3.200000e+01 : f32
    %73 = vector.broadcast %cst_28 : f32 to vector<16x1xf32>
    %74 = arith.divf %72, %73 : vector<16x1xf32>
    %75 = vector.broadcast %74 : vector<16x1xf32> to vector<16x32xf32>
    %76 = arith.subf %70, %75 : vector<16x32xf32>
    %77 = arith.mulf %76, %76 : vector<16x32xf32>
    %cst_29 = arith.constant dense<0.000000e+00> : vector<16xf32>
    %78 = vector.multi_reduction <add>, %77, %cst_29 [1] : vector<16x32xf32> to vector<16xf32>
    %79 = vector.shape_cast %78 : vector<16xf32> to vector<16x1xf32>
    %cst_30 = arith.constant 3.200000e+01 : f32
    %80 = vector.broadcast %cst_30 : f32 to vector<16x1xf32>
    %81 = arith.divf %79, %80 : vector<16x1xf32>
    %82 = vector.broadcast %74 : vector<16x1xf32> to vector<16x32xf32>
    %83 = arith.subf %70, %82 : vector<16x32xf32>
    %cst_31 = arith.constant 9.99999974E-6 : f32
    %84 = vector.broadcast %cst_31 : f32 to vector<16x1xf32>
    %85 = arith.addf %81, %84 : vector<16x1xf32>
    %86 = math.rsqrt %85 : vector<16x1xf32>
    %87 = vector.broadcast %86 : vector<16x1xf32> to vector<16x32xf32>
    %88 = arith.mulf %83, %87 : vector<16x32xf32>
    %89 = vector.broadcast %3 : vector<1x32xf32> to vector<16x32xf32>
    %90 = arith.mulf %88, %89 : vector<16x32xf32>
    %91 = vector.broadcast %4 : vector<1x32xf32> to vector<16x32xf32>
    %92 = arith.addf %90, %91 : vector<16x32xf32>
    %93 = arith.truncf %92 : vector<16x32xf32> to vector<16x32xbf16>
    %c0_32 = arith.constant 0 : index
    %c0_33 = arith.constant 0 : index
    %94 = vector.load %arg4[%c0_32, %c0_33] : memref<32x128xbf16, #tpu.memory_space<vmem>>, vector<32x128xbf16>
    %cst_34 = arith.constant dense<0.000000e+00> : vector<16x128xf32>
    %95 = tpu.matmul %93, %94, %cst_34 {dimension_numbers = #tpu.dot_dimension_numbers<[1], [0], [0], [1], [0, 0, 1, 1], [], []>} : vector<16x32xbf16>, vector<32x128xbf16>, vector<16x128xf32> -> vector<16x128xf32>
    %96 = vector.broadcast %7 : vector<1x128xf32> to vector<16x128xf32>
    %97 = arith.addf %95, %96 : vector<16x128xf32>
    %cst_35 = arith.constant 5.000000e-01 : f32
    %98 = vector.broadcast %cst_35 : f32 to vector<16x128xf32>
    %99 = arith.mulf %98, %97 : vector<16x128xf32>
    %cst_36 = arith.constant 0.707106769 : f32
    %100 = vector.broadcast %cst_36 : f32 to vector<16x128xf32>
    %101 = arith.mulf %97, %100 : vector<16x128xf32>
    %cst_37 = arith.constant -4.000000e+00 : f32
    %cst_38 = arith.constant 4.000000e+00 : f32
    %102 = vector.broadcast %cst_37 : f32 to vector<16x128xf32>
    %103 = arith.maximumf %102, %101 : vector<16x128xf32>
    %104 = vector.broadcast %cst_38 : f32 to vector<16x128xf32>
    %105 = arith.minimumf %104, %103 : vector<16x128xf32>
    %106 = arith.mulf %105, %105 : vector<16x128xf32>
    %107 = arith.mulf %106, %106 : vector<16x128xf32>
    %108 = arith.mulf %107, %107 : vector<16x128xf32>
    %cst_39 = arith.constant 2.29050653E-4 : f32
    %109 = vector.broadcast %cst_39 : f32 to vector<16x128xf32>
    %110 = arith.mulf %109, %107 : vector<16x128xf32>
    %cst_40 = arith.constant 0.00340829091 : f32
    %111 = vector.broadcast %cst_40 : f32 to vector<16x128xf32>
    %112 = arith.mulf %111, %106 : vector<16x128xf32>
    %cst_41 = arith.constant 0.0509556942 : f32
    %113 = vector.broadcast %cst_41 : f32 to vector<16x128xf32>
    %114 = arith.addf %112, %113 : vector<16x128xf32>
    %115 = arith.addf %110, %114 : vector<16x128xf32>
    %116 = arith.mulf %115, %107 : vector<16x128xf32>
    %cst_42 = arith.constant 0.185208321 : f32
    %117 = vector.broadcast %cst_42 : f32 to vector<16x128xf32>
    %118 = arith.mulf %117, %106 : vector<16x128xf32>
    %cst_43 = arith.constant 1.12837911 : f32
    %119 = vector.broadcast %cst_43 : f32 to vector<16x128xf32>
    %120 = arith.addf %118, %119 : vector<16x128xf32>
    %121 = arith.addf %116, %120 : vector<16x128xf32>
    %cst_44 = arith.constant 0.0140704699 : f32
    %122 = vector.broadcast %cst_44 : f32 to vector<16x128xf32>
    %123 = arith.mulf %122, %106 : vector<16x128xf32>
    %cst_45 = arith.constant 0.110985048 : f32
    %124 = vector.broadcast %cst_45 : f32 to vector<16x128xf32>
    %125 = arith.addf %123, %124 : vector<16x128xf32>
    %126 = arith.mulf %125, %107 : vector<16x128xf32>
    %cst_46 = arith.constant 0.497469246 : f32
    %127 = vector.broadcast %cst_46 : f32 to vector<16x128xf32>
    %128 = arith.mulf %127, %106 : vector<16x128xf32>
    %cst_47 = arith.constant 1.000000e+00 : f32
    %129 = vector.broadcast %cst_47 : f32 to vector<16x128xf32>
    %130 = arith.addf %128, %129 : vector<16x128xf32>
    %131 = arith.addf %126, %130 : vector<16x128xf32>
    %cst_48 = arith.constant -1.17916031E-7 : f32
    %132 = vector.broadcast %cst_48 : f32 to vector<16x128xf32>
    %133 = arith.mulf %132, %107 : vector<16x128xf32>
    %cst_49 = arith.constant 2.35479656E-5 : f32
    %134 = vector.broadcast %cst_49 : f32 to vector<16x128xf32>
    %135 = arith.mulf %134, %106 : vector<16x128xf32>
    %cst_50 = arith.constant 0.00101796258 : f32
    %136 = vector.broadcast %cst_50 : f32 to vector<16x128xf32>
    %137 = arith.addf %135, %136 : vector<16x128xf32>
    %138 = arith.addf %133, %137 : vector<16x128xf32>
    %139 = arith.mulf %138, %108 : vector<16x128xf32>
    %140 = arith.addf %139, %131 : vector<16x128xf32>
    %141 = arith.mulf %105, %121 : vector<16x128xf32>
    %142 = arith.divf %141, %140 : vector<16x128xf32>
    %cst_51 = arith.constant 1.000000e+00 : f32
    %143 = vector.broadcast %cst_51 : f32 to vector<16x128xf32>
    %144 = arith.addf %143, %142 : vector<16x128xf32>
    %145 = arith.mulf %99, %144 : vector<16x128xf32>
    %146 = arith.truncf %145 : vector<16x128xf32> to vector<16x128xbf16>
    %c0_52 = arith.constant 0 : index
    %c0_53 = arith.constant 0 : index
    %147 = vector.load %arg5[%c0_52, %c0_53] : memref<128x32xbf16, #tpu.memory_space<vmem>>, vector<128x32xbf16>
    %cst_54 = arith.constant dense<0.000000e+00> : vector<16x32xf32>
    %148 = tpu.matmul %146, %147, %cst_54 {dimension_numbers = #tpu.dot_dimension_numbers<[1], [0], [0], [1], [0, 0, 1, 1], [], []>} : vector<16x128xbf16>, vector<128x32xbf16>, vector<16x32xf32> -> vector<16x32xf32>
    %149 = vector.broadcast %6 : vector<1x32xf32> to vector<16x32xf32>
    %150 = arith.addf %148, %149 : vector<16x32xf32>
    %151 = arith.addf %70, %150 : vector<16x32xf32>
    %c0_55 = arith.constant 0 : index
    %c0_56 = arith.constant 0 : index
    %152 = vector.load %arg8[%c0_55, %c0_56] : memref<16x32xf32, #tpu.memory_space<vmem>>, vector<16x32xf32>
    tpu.vector_store %arg8[%c0_55, %c0_56], %151 {strides = array<i32>} : memref<16x32xf32, #tpu.memory_space<vmem>>, vector<16x32xf32>,
    return
  }
}

</mosaic_0001>

<llo_original>
// kernel: decoder_block_forward.1
$region0: #{decoder_block_forward.1}
  #allocation0 [shape = 'u32[]', space=smem, size = 0x4, offset = 0x4, fixed_abs, tag = 'smem constant byte address 0x4 - core index']
  #allocation1 [shape = 'u32[144,128]{1,0:T(1,128)}', space=vmem, size = 0x12000, scoped, tag = 'internal scratch']
  %s0 = inlined_call_operand.vmem [shape: f32[16,32], index: 0, kind: input, shape index: {}]
  %s1 = inlined_call_operand.vmem [shape: f32[7,128], index: 1, kind: input, shape index: {}]
  %s2 = inlined_call_operand.vmem [shape: bf16[32,96], index: 2, kind: input, shape index: {}]
  %s3 = inlined_call_operand.vmem [shape: bf16[32,32], index: 3, kind: input, shape index: {}]
  %s4 = inlined_call_operand.vmem [shape: bf16[32,128], index: 4, kind: input, shape index: {}]
  %s5 = inlined_call_operand.vmem [shape: bf16[128,32], index: 5, kind: input, shape index: {}]
  %s6 = inlined_call_operand.vmem [shape: f32[64,32], index: 6, kind: input, shape index: {}]
  %s7 = inlined_call_operand.vmem [shape: f32[64,16], index: 7, kind: input, shape index: {}]
  %s8 = inlined_call_operand.hbm [shape: f32[16,32], index: 8, kind: output, shape index: {}]
  %s9 = sld [smem:[#allocation0]]
  $region42: #{decoder_block_forward.1} parent=0
    _
  %s11 = ssub.s32 1, %s9
  %s12 = scalar_select 0, %s11, %s9
  $region1: #{decoder_block_forward.1} parent=0
    #allocation2 [shape = 'u8[8192]{0}', space=vmem, size = 0x2000, scoped, tag = 'output window, operand 0, single buffered']
    #allocation3 [shape = 's32[1]{0}', space=sflag, size = 0x4, scoped, tag = 'scoped memory for decoder_block_forward.1']
    %13 = vsyncpa [#allocation3], 0
    // Predicated region
    $region2: #{decoder_block_forward.1} parent=1 // pred_check
      _
    $region3: #{decoder_block_forward.1} parent=1 // pred_check_branch
      %15 = sbr.rel (0) target = $region5
    $region4: #{decoder_block_forward.1} parent=1 // pred_region
      _
    $region5: #{decoder_block_forward.1} parent=1 // pred_fallthru
      _
    // Predicated region
    $region6: #{decoder_block_forward.1} parent=1 // pred_check
      _
    $region7: #{decoder_block_forward.1} parent=1 // pred_check_branch
      %17 = sbr.rel (0) target = $region9
    $region8: #{decoder_block_forward.1} parent=1 // pred_region
      _
    $region9: #{decoder_block_forward.1} parent=1 // pred_fallthru
      _
    // Predicated region
    $region10: #{decoder_block_forward.1} parent=1 // pred_check
      _
    $region11: #{decoder_block_forward.1} parent=1 // pred_check_branch
      %19 = sbr.rel (0) target = $region13
    $region12: #{decoder_block_forward.1} parent=1 // pred_region
      _
    $region13: #{decoder_block_forward.1} parent=1 // pred_fallthru
      _
    // Predicated region
    $region14: #{decoder_block_forward.1} parent=1 // pred_check
      _
    $region15: #{decoder_block_forward.1} parent=1 // pred_check_branch
      %21 = sbr.rel (0) target = $region17
    $region16: #{decoder_block_forward.1} parent=1 // pred_region
      _
    $region17: #{decoder_block_forward.1} parent=1 // pred_fallthru
      _
    // Predicated region
    $region18: #{decoder_block_forward.1} parent=1 // pred_check
      _
    $region19: #{decoder_block_forward.1} parent=1 // pred_check_branch
      %23 = sbr.rel (0) target = $region21
    $region20: #{decoder_block_forward.1} parent=1 // pred_region
      _
    $region21: #{decoder_block_forward.1} parent=1 // pred_fallthru
      _
    // Predicated region
    $region22: #{decoder_block_forward.1} parent=1 // pred_check
      _
    $region23: #{decoder_block_forward.1} parent=1 // pred_check_branch
      %25 = sbr.rel (0) target = $region25
    $region24: #{decoder_block_forward.1} parent=1 // pred_region
      _
    $region25: #{decoder_block_forward.1} parent=1 // pred_fallthru
      _
    // Predicated region
    $region26: #{decoder_block_forward.1} parent=1 // pred_check
      _
    $region27: #{decoder_block_forward.1} parent=1 // pred_check_branch
      %27 = sbr.rel (0) target = $region29
    $region28: #{decoder_block_forward.1} parent=1 // pred_region
      _
    $region29: #{decoder_block_forward.1} parent=1 // pred_fallthru
      _
    // Predicated region
    $region30: #{decoder_block_forward.1} parent=1 // pred_check
      _
    $region31: #{decoder_block_forward.1} parent=1 // pred_check_branch
      %29 = sbr.rel (0) target = $region33
    $region32: #{decoder_block_forward.1} parent=1 // pred_region
      _
    $region33: #{decoder_block_forward.1} parent=1 // pred_fallthru
      _
    %v31 = vld [vmem:[%s0] sm:$0xff]
    %v32 = vld [vmem:[%s0 + $0x8] sm:$0xff]
    %v33 = vld [vmem:[%s1] sm:$0x1]
    %v34 = vld [vmem:[%s1 + $0x1] sm:$0x1]
    %v35 = vld [vmem:[%s1 + $0x2] sm:$0x1]
    %v36 = vld [vmem:[%s1 + $0x3] sm:$0x1]
    %v37 = vld [vmem:[%s1 + $0x4] sm:$0x1]
    %v38 = vld [vmem:[%s1 + $0x5] sm:$0x1]
    %v39 = vld [vmem:[%s1 + $0x6] sm:$0x1]
    %vm40 = vcmask 261120
    %v41 = vsel %vm40, %v31, 0.0
    %42 = vadd.xlane.f32.xlu0 %v41
    %v43 = vpop.xlane.xlu0 %42
    %v44 = vsel %vm40, %v32, 0.0
    %45 = vadd.xlane.f32.xlu0 %v44
    %v46 = vpop.xlane.xlu0 %45
    %v47 = vrcp.pop 32.0
    %v48 = vmul.f32 %v43, %v47
    %v49 = vmul.f32 %v46, %v47
    %v50 = vsub.f32 %v31, %v48
    %v51 = vsub.f32 %v32, %v49
    %v52 = vmul.f32 %v50, %v50
    %v53 = vmul.f32 %v51, %v51
    %v54 = vsel %vm40, %v52, 0.0
    %55 = vadd.xlane.f32.xlu0 %v54
    %v56 = vpop.xlane.xlu0 %55
    %v57 = vsel %vm40, %v53, 0.0
    %58 = vadd.xlane.f32.xlu0 %v57
    %v59 = vpop.xlane.xlu0 %58
    %v60 = vmul.f32 %v56, %v47
    %v61 = vmul.f32 %v59, %v47
    %v62 = vadd.f32 %v60, 1e-05
    %v63 = vadd.f32 %v61, 1e-05
    %v64 = vrsqrt.pop %v62
    %v65 = vrsqrt.pop %v63
    %v66 = vmul.f32 %v50, %v64
    %v67 = vmul.f32 %v51, %v65
    %v68 = vlaneseq
    %v69 = vshrl.u32 %v68, 7
    %v70 = vsub.s32 0, %v69
    %v71 = vrot.slane %v33, %v70
    %v72 = vmul.f32 %v66, %v71
    %v73 = vmul.f32 %v67, %v71
    %v74 = vlaneseq
    %v75 = vshrl.u32 %v74, 7
    %v76 = vsub.s32 0, %v75
    %v77 = vrot.slane %v34, %v76
    %v78 = vadd.f32 %v72, %v77
    %v79 = vadd.f32 %v73, %v77
    %v80 = vpack.c.bf16 %v79, %v78
    %v81 = vld [vmem:[%s2] sm:$0xf]
    %v82 = vld [vmem:[%s2 + $0x4] sm:$0xf]
    %v83 = vld [vmem:[%s2 + $0x8] sm:$0xf]
    %v84 = vld [vmem:[%s2 + $0xc] sm:$0xf]
    %v89 = vunpack.c.l.b16 %v81
    %v90 = vunpack.c.l.b16 %v82
    %v91 = vunpack.c.l.b16 %v83
    %v92 = vunpack.c.l.b16 %v84
    %v93 = vpack.c.b16 %v90, %v89
    %v94 = vpack.c.b16 %v92, %v91
    %v98 = vsel %vm40, %v80, 0
    %100 = vmatprep.subr.bf16.mxu0 0
    %101 = vmatpush1.bf16.msra.mxu0 %v93
    %102 = vmatprep.subr.bf16.mxu0 0
    %103 = vmatpush1.bf16.msra.mxu0 %v94
    %104 = vmatprep.subr.bf16.mxu0 0
    %105 = vmatpush1.bf16.msra.mxu0 0
    %106 = vmatprep.subr.bf16.mxu0 0
    %107 = vmatpush1.bf16.msra.mxu0 0
    %108 = vmatprep.subr.bf16.mxu0 0
    %109 = vmatpush1.bf16.msra.mxu0 0
    %110 = vmatprep.subr.bf16.mxu0 0
    %111 = vmatpush1.bf16.msra.mxu0 0
    %112 = vmatprep.subr.bf16.mxu0 0
    %113 = vmatpush1.bf16.msra.mxu0 0
    %114 = vmatprep.subr.bf16.mxu0 0
    %115 = vmatpush1.bf16.msra.mxu0 0
    %116 = vmatprep.subr.bf16.mxu0 0
    %117 = vmatpush1.bf16.msra.mxu0 0
    %118 = vmatprep.subr.bf16.mxu0 0
    %119 = vmatpush1.bf16.msra.mxu0 0
    %120 = vmatprep.subr.bf16.mxu0 0
    %121 = vmatpush1.bf16.msra.mxu0 0
    %122 = vmatprep.subr.bf16.mxu0 0
    %123 = vmatpush1.bf16.msra.mxu0 0
    %124 = vmatprep.subr.bf16.mxu0 0
    %125 = vmatpush1.bf16.msra.mxu0 0
    %126 = vmatprep.subr.bf16.mxu0 0
    %127 = vmatpush1.bf16.msra.mxu0 0
    %128 = vmatprep.subr.bf16.mxu0 0
    %129 = vmatpush1.bf16.msra.mxu0 0
    %130 = vmatprep.subr.bf16.mxu0 0
    %131 = vmatpush1.bf16.msra.mxu0 0
    %132 = vmatprep.mubr.bf16.mxu0 0
    %133 = vmatmul.mubr.bf16.gmra.mrb[0].mxu0 %v98
    %v134 = vpop.f32.mrb[0].mxu0
    %v135 = vadd.f32 0.0, %v134
    %v136 = vpop.f32.mrb[0].mxu0
    %v137 = vpop.f32.mrb[0].mxu0
    %v138 = vadd.f32 0.0, %v137
    %v139 = vpop.f32.mrb[0].mxu0
    %140 = vdwg.mxu0
    %v141 = vld [vmem:[%s6] sm:$0xff]
    %v142 = vld [vmem:[%s6 + $0x8] sm:$0xff]
    %v143 = vld [vmem:[%s6 + $0x10] sm:$0xff]
    %v144 = vld [vmem:[%s6 + $0x18] sm:$0xff]
    %v145 = vld [vmem:[%s6 + $0x20] sm:$0xff]
    %v146 = vld [vmem:[%s6 + $0x28] sm:$0xff]
    %v147 = vld [vmem:[%s6 + $0x30] sm:$0xff]
    %v148 = vld [vmem:[%s6 + $0x38] sm:$0xff]
    %v149 = vpack.c.bf16 %v138, %v135
    %v150 = vmul.f32 %v135, %v141
    %v151 = vmul.f32 %v138, %v142
    %v152 = vmul.f32 %v135, %v143
    %v153 = vmul.f32 %v138, %v144
    %v154 = vmul.f32 %v135, %v145
    %v155 = vmul.f32 %v138, %v146
    %v156 = vmul.f32 %v135, %v147
    %v157 = vmul.f32 %v138, %v148
    %v158 = vpack.c.bf16 %v151, %v150
    %v159 = vpack.c.bf16 %v153, %v152
    %v160 = vpack.c.bf16 %v155, %v154
    %v161 = vpack.c.bf16 %v157, %v156
    %v162 = vld [vmem:[%s7] sm:$0xff]
    %v163 = vld [vmem:[%s7 + $0x8] sm:$0xff]
    %v164 = vld [vmem:[%s7 + $0x10] sm:$0xff]
    %v165 = vld [vmem:[%s7 + $0x18] sm:$0xff]
    %v166 = vld [vmem:[%s7 + $0x20] sm:$0xff]
    %v167 = vld [vmem:[%s7 + $0x28] sm:$0xff]
    %v168 = vld [vmem:[%s7 + $0x30] sm:$0xff]
    %v169 = vld [vmem:[%s7 + $0x38] sm:$0xff]
    %171 = vrot.lane.b32.xlu0 %v149, 96
    %v172 = vpop.permute.xlu0 %171
    %v174 = vsel %vm40, %v158, 0
    %v177 = vsel %vm40, %v159, 0
    %v180 = vsel %vm40, %v160, 0
    %v183 = vsel %vm40, %v161, 0
    %v186 = vsel %vm40, %v172, 0
    %188 = vmatprep.subr.bf16.mxu0 0
    %189 = vmatpush1.bf16.xpose.msra.mxu0 %v186
    %190 = vmatprep.subr.bf16.mxu0 0
    %191 = vmatpush1.bf16.xpose.msra.mxu0 0
    %192 = vmatprep.subr.bf16.mxu0 0
    %193 = vmatpush1.bf16.xpose.msra.mxu0 0
    %194 = vmatprep.subr.bf16.mxu0 0
    %195 = vmatpush1.bf16.xpose.msra.mxu0 0
    %196 = vmatprep.subr.bf16.mxu0 0
    %197 = vmatpush1.bf16.xpose.msra.mxu0 0
    %198 = vmatprep.subr.bf16.mxu0 0
    %199 = vmatpush1.bf16.xpose.msra.mxu0 0
    %200 = vmatprep.subr.bf16.mxu0 0
    %201 = vmatpush1.bf16.xpose.msra.mxu0 0
    %202 = vmatprep.subr.bf16.mxu0 0
    %203 = vmatpush1.bf16.xpose.msra.mxu0 0
    %204 = vmatprep.subr.bf16.mxu0 0
    %205 = vmatpush1.bf16.xpose.msra.mxu0 0
    %206 = vmatprep.subr.bf16.mxu0 0
    %207 = vmatpush1.bf16.xpose.msra.mxu0 0
    %208 = vmatprep.subr.bf16.mxu0 0
    %209 = vmatpush1.bf16.xpose.msra.mxu0 0
    %210 = vmatprep.subr.bf16.mxu0 0
    %211 = vmatpush1.bf16.xpose.msra.mxu0 0
    %212 = vmatprep.subr.bf16.mxu0 0
    %213 = vmatpush1.bf16.xpose.msra.mxu0 0
    %214 = vmatprep.subr.bf16.mxu0 0
    %215 = vmatpush1.bf16.xpose.msra.mxu0 0
    %216 = vmatprep.subr.bf16.mxu0 0
    %217 = vmatpush1.bf16.xpose.msra.mxu0 0
    %218 = vmatprep.subr.bf16.mxu0 0
    %219 = vmatpush1.bf16.xpose.msra.mxu0 0
    %220 = vmatprep.mubr.bf16.mxu0 0
    %221 = vmatmul.mubr.bf16.gmra.mrb[0].mxu0 %v174
    %v222 = vpop.f32.mrb[0].mxu0
    %v223 = vadd.f32 %v162, %v222
    %v224 = vpop.f32.mrb[0].mxu0
    %v225 = vpop.f32.mrb[0].mxu0
    %v226 = vadd.f32 %v163, %v225
    %v227 = vpop.f32.mrb[0].mxu0
    %228 = vmatprep.mubr.bf16.mxu0 0
    %229 = vmatmul.mubr.bf16.gmra.mrb[0].mxu0 %v177
    %v230 = vpop.f32.mrb[0].mxu0
    %v231 = vadd.f32 %v164, %v230
    %v232 = vpop.f32.mrb[0].mxu0
    %v233 = vpop.f32.mrb[0].mxu0
    %v234 = vadd.f32 %v165, %v233
    %v235 = vpop.f32.mrb[0].mxu0
    %236 = vmatprep.mubr.bf16.mxu0 0
    %237 = vmatmul.mubr.bf16.gmra.mrb[0].mxu0 %v180
    %v238 = vpop.f32.mrb[0].mxu0
    %v239 = vadd.f32 %v166, %v238
    %v240 = vpop.f32.mrb[0].mxu0
    %v241 = vpop.f32.mrb[0].mxu0
    %v242 = vadd.f32 %v167, %v241
    %v243 = vpop.f32.mrb[0].mxu0
    %244 = vmatprep.mubr.bf16.mxu0 0
    %245 = vmatmul.mubr.bf16.gmra.mrb[0].mxu0 %v183
    %v246 = vpop.f32.mrb[0].mxu0
    %v247 = vadd.f32 %v168, %v246
    %v248 = vpop.f32.mrb[0].mxu0
    %v249 = vpop.f32.mrb[0].mxu0
    %v250 = vadd.f32 %v169, %v249
    %v251 = vpop.f32.mrb[0].mxu0
    %252 = vdwg.mxu0
    %vm253 = vcmask 130048
    %v254 = vsel %vm253, %v223, -inf
    %255 = vmax.xlane.f32.xlu0 %v254
    %v256 = vpop.xlane.xlu0 %255
    %v257 = vsel %vm253, %v226, -inf
    %258 = vmax.xlane.f32.xlu0 %v257
    %v259 = vpop.xlane.xlu0 %258
    %v260 = vsel %vm253, %v231, -inf
    %261 = vmax.xlane.f32.xlu0 %v260
    %v262 = vpop.xlane.xlu0 %261
    %v263 = vsel %vm253, %v234, -inf
    %264 = vmax.xlane.f32.xlu0 %v263
    %v265 = vpop.xlane.xlu0 %264
    %v266 = vsel %vm253, %v239, -inf
    %267 = vmax.xlane.f32.xlu0 %v266
    %v268 = vpop.xlane.xlu0 %267
    %v269 = vsel %vm253, %v242, -inf
    %270 = vmax.xlane.f32.xlu0 %v269
    %v271 = vpop.xlane.xlu0 %270
    %v272 = vsel %vm253, %v247, -inf
    %273 = vmax.xlane.f32.xlu0 %v272
    %v274 = vpop.xlane.xlu0 %273
    %v275 = vsel %vm253, %v250, -inf
    %276 = vmax.xlane.f32.xlu0 %v275
    %v277 = vpop.xlane.xlu0 %276
    %v278 = vsub.f32 %v223, %v256
    %v279 = vsub.f32 %v226, %v259
    %v280 = vsub.f32 %v231, %v262
    %v281 = vsub.f32 %v234, %v265
    %v282 = vsub.f32 %v239, %v268
    %v283 = vsub.f32 %v242, %v271
    %v284 = vsub.f32 %v247, %v274
    %v285 = vsub.f32 %v250, %v277
    %v286 = vmul.f32 %v278, 1.442695
    %v287 = vpow.pop %v286
    %v288 = vmul.f32 %v279, 1.442695
    %v289 = vpow.pop %v288
    %v290 = vmul.f32 %v280, 1.442695
    %v291 = vpow.pop %v290
    %v292 = vmul.f32 %v281, 1.442695
    %v293 = vpow.pop %v292
    %v294 = vmul.f32 %v282, 1.442695
    %v295 = vpow.pop %v294
    %v296 = vmul.f32 %v283, 1.442695
    %v297 = vpow.pop %v296
    %v298 = vmul.f32 %v284, 1.442695
    %v299 = vpow.pop %v298
    %v300 = vmul.f32 %v285, 1.442695
    %v301 = vpow.pop %v300
    %v302 = vsel %vm253, %v287, 0.0
    %303 = vadd.xlane.f32.xlu0 %v302
    %v304 = vpop.xlane.xlu0 %303
    %v305 = vsel %vm253, %v289, 0.0
    %306 = vadd.xlane.f32.xlu0 %v305
    %v307 = vpop.xlane.xlu0 %306
    %v308 = vsel %vm253, %v291, 0.0
    %309 = vadd.xlane.f32.xlu0 %v308
    %v310 = vpop.xlane.xlu0 %309
    %v311 = vsel %vm253, %v293, 0.0
    %312 = vadd.xlane.f32.xlu0 %v311
    %v313 = vpop.xlane.xlu0 %312
    %v314 = vsel %vm253, %v295, 0.0
    %315 = vadd.xlane.f32.xlu0 %v314
    %v316 = vpop.xlane.xlu0 %315
    %v317 = vsel %vm253, %v297, 0.0
    %318 = vadd.xlane.f32.xlu0 %v317
    %v319 = vpop.xlane.xlu0 %318
    %v320 = vsel %vm253, %v299, 0.0
    %321 = vadd.xlane.f32.xlu0 %v320
    %v322 = vpop.xlane.xlu0 %321
    %v323 = vsel %vm253, %v301, 0.0
    %324 = vadd.xlane.f32.xlu0 %v323
    %v325 = vpop.xlane.xlu0 %324
    %v326 = vrcp.pop %v304
    %v327 = vrcp.pop %v307
    %v328 = vrcp.pop %v310
    %v329 = vrcp.pop %v313
    %v330 = vrcp.pop %v316
    %v331 = vrcp.pop %v319
    %v332 = vrcp.pop %v322
    %v333 = vrcp.pop %v325
    %v334 = vmul.f32 %v287, %v326
    %v335 = vmul.f32 %v289, %v327
    %v336 = vmul.f32 %v291, %v328
    %v337 = vmul.f32 %v293, %v329
    %v338 = vmul.f32 %v295, %v330
    %v339 = vmul.f32 %v297, %v331
    %v340 = vmul.f32 %v299, %v332
    %v341 = vmul.f32 %v301, %v333
    %v342 = vpack.c.bf16 %v335, %v334
    %v343 = vpack.c.bf16 %v337, %v336
    %v344 = vpack.c.bf16 %v339, %v338
    %v345 = vpack.c.bf16 %v341, %v340
    %346 = vrot.lane.b32.xlu0 %v149, 64
    %v347 = vpop.permute.xlu0 %346
    %v350 = vsel %vm253, %v342, 0
    %v353 = vsel %vm253, %v343, 0
    %v356 = vsel %vm253, %v344, 0
    %v359 = vsel %vm253, %v345, 0
    %361 = vmatprep.subr.bf16.mxu0 0
    %362 = vmatpush1.bf16.msra.mxu0 %v347
    %363 = vmatprep.subr.bf16.mxu0 0
    %364 = vmatpush1.bf16.msra.mxu0 0
    %365 = vmatprep.subr.bf16.mxu0 0
    %366 = vmatpush1.bf16.msra.mxu0 0
    %367 = vmatprep.subr.bf16.mxu0 0
    %368 = vmatpush1.bf16.msra.mxu0 0
    %369 = vmatprep.subr.bf16.mxu0 0
    %370 = vmatpush1.bf16.msra.mxu0 0
    %371 = vmatprep.subr.bf16.mxu0 0
    %372 = vmatpush1.bf16.msra.mxu0 0
    %373 = vmatprep.subr.bf16.mxu0 0
    %374 = vmatpush1.bf16.msra.mxu0 0
    %375 = vmatprep.subr.bf16.mxu0 0
    %376 = vmatpush1.bf16.msra.mxu0 0
    %377 = vmatprep.subr.bf16.mxu0 0
    %378 = vmatpush1.bf16.msra.mxu0 0
    %379 = vmatprep.subr.bf16.mxu0 0
    %380 = vmatpush1.bf16.msra.mxu0 0
    %381 = vmatprep.subr.bf16.mxu0 0
    %382 = vmatpush1.bf16.msra.mxu0 0
    %383 = vmatprep.subr.bf16.mxu0 0
    %384 = vmatpush1.bf16.msra.mxu0 0
    %385 = vmatprep.subr.bf16.mxu0 0
    %386 = vmatpush1.bf16.msra.mxu0 0
    %387 = vmatprep.subr.bf16.mxu0 0
    %388 = vmatpush1.bf16.msra.mxu0 0
    %389 = vmatprep.subr.bf16.mxu0 0
    %390 = vmatpush1.bf16.msra.mxu0 0
    %391 = vmatprep.subr.bf16.mxu0 0
    %392 = vmatpush1.bf16.msra.mxu0 0
    %393 = vmatprep.mubr.bf16.mxu0 0
    %394 = vmatmul.mubr.bf16.gmra.mrb[0].mxu0 %v350
    %v395 = vpop.f32.mrb[0].mxu0
    %v396 = vadd.f32 0.0, %v395
    %v397 = vpop.f32.mrb[0].mxu0
    %v398 = vpop.f32.mrb[0].mxu0
    %v399 = vadd.f32 0.0, %v398
    %v400 = vpop.f32.mrb[0].mxu0
    %401 = vmatprep.mubr.bf16.mxu0 0
    %402 = vmatmul.mubr.bf16.gmra.mrb[0].mxu0 %v353
    %v403 = vpop.f32.mrb[0].mxu0
    %v404 = vadd.f32 0.0, %v403
    %v405 = vpop.f32.mrb[0].mxu0
    %v406 = vpop.f32.mrb[0].mxu0
    %v407 = vadd.f32 0.0, %v406
    %v408 = vpop.f32.mrb[0].mxu0
    %409 = vmatprep.mubr.bf16.mxu0 0
    %410 = vmatmul.mubr.bf16.gmra.mrb[0].mxu0 %v356
    %v411 = vpop.f32.mrb[0].mxu0
    %v412 = vadd.f32 0.0, %v411
    %v413 = vpop.f32.mrb[0].mxu0
    %v414 = vpop.f32.mrb[0].mxu0
    %v415 = vadd.f32 0.0, %v414
    %v416 = vpop.f32.mrb[0].mxu0
    %417 = vmatprep.mubr.bf16.mxu0 0
    %418 = vmatmul.mubr.bf16.gmra.mrb[0].mxu0 %v359
    %v419 = vpop.f32.mrb[0].mxu0
    %v420 = vadd.f32 0.0, %v419
    %v421 = vpop.f32.mrb[0].mxu0
    %v422 = vpop.f32.mrb[0].mxu0
    %v423 = vadd.f32 0.0, %v422
    %v424 = vpop.f32.mrb[0].mxu0
    %425 = vdwg.mxu0
    %v426 = vmul.f32 %v396, %v141
    %v427 = vmul.f32 %v399, %v142
    %v428 = vmul.f32 %v404, %v143
    %v429 = vmul.f32 %v407, %v144
    %v430 = vmul.f32 %v412, %v145
    %v431 = vmul.f32 %v415, %v146
    %v432 = vmul.f32 %v420, %v147
    %v433 = vmul.f32 %v423, %v148
    %v434 = vadd.f32 %v426, %v428
    %v435 = vadd.f32 %v427, %v429
    %v436 = vadd.f32 %v434, %v430
    %v437 = vadd.f32 %v435, %v431
    %v438 = vadd.f32 %v436, %v432
    %v439 = vadd.f32 %v437, %v433
    %v440 = vpack.c.bf16 %v439, %v438
    %v441 = vld [vmem:[%s3] sm:$0xf]
    %v442 = vld [vmem:[%s3 + $0x4] sm:$0xf]
    %v443 = vld [vmem:[%s3 + $0x8] sm:$0xf]
    %v444 = vld [vmem:[%s3 + $0xc] sm:$0xf]
    %v449 = vunpack.c.l.b16 %v441
    %v450 = vunpack.c.l.b16 %v442
    %v451 = vunpack.c.l.b16 %v443
    %v452 = vunpack.c.l.b16 %v444
    %v453 = vpack.c.b16 %v450, %v449
    %v454 = vpack.c.b16 %v452, %v451
    %v458 = vsel %vm40, %v440, 0
    %460 = vmatprep.subr.bf16.mxu0 0
    %461 = vmatpush1.bf16.msra.mxu0 %v453
    %462 = vmatprep.subr.bf16.mxu0 0
    %463 = vmatpush1.bf16.msra.mxu0 %v454
    %464 = vmatprep.subr.bf16.mxu0 0
    %465 = vmatpush1.bf16.msra.mxu0 0
    %466 = vmatprep.subr.bf16.mxu0 0
    %467 = vmatpush1.bf16.msra.mxu0 0
    %468 = vmatprep.subr.bf16.mxu0 0
    %469 = vmatpush1.bf16.msra.mxu0 0
    %470 = vmatprep.subr.bf16.mxu0 0
    %471 = vmatpush1.bf16.msra.mxu0 0
    %472 = vmatprep.subr.bf16.mxu0 0
    %473 = vmatpush1.bf16.msra.mxu0 0
    %474 = vmatprep.subr.bf16.mxu0 0
    %475 = vmatpush1.bf16.msra.mxu0 0
    %476 = vmatprep.subr.bf16.mxu0 0
    %477 = vmatpush1.bf16.msra.mxu0 0
    %478 = vmatprep.subr.bf16.mxu0 0
    %479 = vmatpush1.bf16.msra.mxu0 0
    %480 = vmatprep.subr.bf16.mxu0 0
    %481 = vmatpush1.bf16.msra.mxu0 0
    %482 = vmatprep.subr.bf16.mxu0 0
    %483 = vmatpush1.bf16.msra.mxu0 0
    %484 = vmatprep.subr.bf16.mxu0 0
    %485 = vmatpush1.bf16.msra.mxu0 0
    %486 = vmatprep.subr.bf16.mxu0 0
    %487 = vmatpush1.bf16.msra.mxu0 0
    %488 = vmatprep.subr.bf16.mxu0 0
    %489 = vmatpush1.bf16.msra.mxu0 0
    %490 = vmatprep.subr.bf16.mxu0 0
    %491 = vmatpush1.bf16.msra.mxu0 0
    %492 = vmatprep.mubr.bf16.mxu0 0
    %493 = vmatmul.mubr.bf16.gmra.mrb[0].mxu0 %v458
    %v494 = vpop.f32.mrb[0].mxu0
    %v495 = vadd.f32 0.0, %v494
    %v496 = vpop.f32.mrb[0].mxu0
    %v497 = vpop.f32.mrb[0].mxu0
    %v498 = vadd.f32 0.0, %v497
    %v499 = vpop.f32.mrb[0].mxu0
    %500 = vdwg.mxu0
    %v501 = vadd.f32 %v31, %v495
    %v502 = vadd.f32 %v32, %v498
    %v503 = vlaneseq
    %v504 = vshrl.u32 %v503, 7
    %v505 = vsub.s32 0, %v504
    %v506 = vrot.slane %v37, %v505
    %v507 = vadd.f32 %v501, %v506
    %v508 = vadd.f32 %v502, %v506
    %v509 = vsel %vm40, %v507, 0.0
    %510 = vadd.xlane.f32.xlu0 %v509
    %v511 = vpop.xlane.xlu0 %510
    %v512 = vsel %vm40, %v508, 0.0
    %513 = vadd.xlane.f32.xlu0 %v512
    %v514 = vpop.xlane.xlu0 %513
    %v515 = vmul.f32 %v511, %v47
    %v516 = vmul.f32 %v514, %v47
    %v517 = vsub.f32 %v507, %v515
    %v518 = vsub.f32 %v508, %v516
    %v519 = vmul.f32 %v517, %v517
    %v520 = vmul.f32 %v518, %v518
    %v521 = vsel %vm40, %v519, 0.0
    %522 = vadd.xlane.f32.xlu0 %v521
    %v523 = vpop.xlane.xlu0 %522
    %v524 = vsel %vm40, %v520, 0.0
    %525 = vadd.xlane.f32.xlu0 %v524
    %v526 = vpop.xlane.xlu0 %525
    %v527 = vmul.f32 %v523, %v47
    %v528 = vmul.f32 %v526, %v47
    %v529 = vadd.f32 %v527, 1e-05
    %v530 = vadd.f32 %v528, 1e-05
    %v531 = vrsqrt.pop %v529
    %v532 = vrsqrt.pop %v530
    %v533 = vmul.f32 %v517, %v531
    %v534 = vmul.f32 %v518, %v532
    %v535 = vlaneseq
    %v536 = vshrl.u32 %v535, 7
    %v537 = vsub.s32 0, %v536
    %v538 = vrot.slane %v35, %v537
    %v539 = vmul.f32 %v533, %v538
    %v540 = vmul.f32 %v534, %v538
    %v541 = vlaneseq
    %v542 = vshrl.u32 %v541, 7
    %v543 = vsub.s32 0, %v542
    %v544 = vrot.slane %v36, %v543
    %v545 = vadd.f32 %v539, %v544
    %v546 = vadd.f32 %v540, %v544
    %v547 = vpack.c.bf16 %v546, %v545
    %v548 = vld [vmem:[%s4] sm:$0xf]
    %v549 = vld [vmem:[%s4 + $0x4] sm:$0xf]
    %v550 = vld [vmem:[%s4 + $0x8] sm:$0xf]
    %v551 = vld [vmem:[%s4 + $0xc] sm:$0xf]
    %v552 = vlaneseq
    %v553 = vshrl.u32 %v552, 7
    %v554 = vsub.s32 0, %v553
    %v555 = vrot.slane %v39, %v554
    %v560 = vunpack.c.l.b16 %v548
    %v561 = vunpack.c.l.b16 %v549
    %v562 = vunpack.c.l.b16 %v550
    %v563 = vunpack.c.l.b16 %v551
    %v564 = vpack.c.b16 %v561, %v560
    %v565 = vpack.c.b16 %v563, %v562
    %v569 = vsel %vm40, %v547, 0
    %571 = vmatprep.subr.bf16.mxu0 0
    %572 = vmatpush1.bf16.msra.mxu0 %v564
    %573 = vmatprep.subr.bf16.mxu0 0
    %574 = vmatpush1.bf16.msra.mxu0 %v565
    %575 = vmatprep.subr.bf16.mxu0 0
    %576 = vmatpush1.bf16.msra.mxu0 0
    %577 = vmatprep.subr.bf16.mxu0 0
    %578 = vmatpush1.bf16.msra.mxu0 0
    %579 = vmatprep.subr.bf16.mxu0 0
    %580 = vmatpush1.bf16.msra.mxu0 0
    %581 = vmatprep.subr.bf16.mxu0 0
    %582 = vmatpush1.bf16.msra.mxu0 0
    %583 = vmatprep.subr.bf16.mxu0 0
    %584 = vmatpush1.bf16.msra.mxu0 0
    %585 = vmatprep.subr.bf16.mxu0 0
    %586 = vmatpush1.bf16.msra.mxu0 0
    %587 = vmatprep.subr.bf16.mxu0 0
    %588 = vmatpush1.bf16.msra.mxu0 0
    %589 = vmatprep.subr.bf16.mxu0 0
    %590 = vmatpush1.bf16.msra.mxu0 0
    %591 = vmatprep.subr.bf16.mxu0 0
    %592 = vmatpush1.bf16.msra.mxu0 0
    %593 = vmatprep.subr.bf16.mxu0 0
    %594 = vmatpush1.bf16.msra.mxu0 0
    %595 = vmatprep.subr.bf16.mxu0 0
    %596 = vmatpush1.bf16.msra.mxu0 0
    %597 = vmatprep.subr.bf16.mxu0 0
    %598 = vmatpush1.bf16.msra.mxu0 0
    %599 = vmatprep.subr.bf16.mxu0 0
    %600 = vmatpush1.bf16.msra.mxu0 0
    %601 = vmatprep.subr.bf16.mxu0 0
    %602 = vmatpush1.bf16.msra.mxu0 0
    %603 = vmatprep.mubr.bf16.mxu0 0
    %604 = vmatmul.mubr.bf16.gmra.mrb[0].mxu0 %v569
    %v605 = vpop.f32.mrb[0].mxu0
    %v606 = vadd.f32 %v555, %v605
    %v607 = vpop.f32.mrb[0].mxu0
    %v608 = vpop.f32.mrb[0].mxu0
    %v609 = vadd.f32 %v555, %v608
    %v610 = vpop.f32.mrb[0].mxu0
    %611 = vdwg.mxu0
    %v612 = vmul.f32 %v606, 0.5
    %v613 = vmul.f32 %v609, 0.5
    %v614 = vmul.f32 %v606, 0.70710677
    %v615 = vmul.f32 %v609, 0.70710677
    %v616 = vmax.f32 %v614, -4.0
    %v617 = vmax.f32 %v615, -4.0
    %v618 = vmin.f32 %v616, 4.0
    %v619 = vmin.f32 %v617, 4.0
    %v620 = vmul.f32 %v618, %v618
    %v621 = vmul.f32 %v619, %v619
    %v622 = vmul.f32 %v620, %v620
    %v623 = vmul.f32 %v621, %v621
    %v624 = vmul.f32 %v622, %v622
    %v625 = vmul.f32 %v623, %v623
    %v626 = vmul.f32 %v622, 0.00022905065
    %v627 = vmul.f32 %v623, 0.00022905065
    %v628 = vmul.f32 %v620, 0.003408291
    %v629 = vmul.f32 %v621, 0.003408291
    %v630 = vadd.f32 %v628, 0.050955694
    %v631 = vadd.f32 %v629, 0.050955694
    %v632 = vadd.f32 %v626, %v630
    %v633 = vadd.f32 %v627, %v631
    %v634 = vmul.f32 %v632, %v622
    %v635 = vmul.f32 %v633, %v623
    %v636 = vmul.f32 %v620, 0.18520832
    %v637 = vmul.f32 %v621, 0.18520832
    %v638 = vadd.f32 %v636, 1.1283791
    %v639 = vadd.f32 %v637, 1.1283791
    %v640 = vadd.f32 %v634, %v638
    %v641 = vadd.f32 %v635, %v639
    %v642 = vmul.f32 %v620, 0.01407047
    %v643 = vmul.f32 %v621, 0.01407047
    %v644 = vadd.f32 %v642, 0.11098505
    %v645 = vadd.f32 %v643, 0.11098505
    %v646 = vmul.f32 %v644, %v622
    %v647 = vmul.f32 %v645, %v623
    %v648 = vmul.f32 %v620, 0.49746925
    %v649 = vmul.f32 %v621, 0.49746925
    %v650 = vadd.f32 %v648, 1.0
    %v651 = vadd.f32 %v649, 1.0
    %v652 = vadd.f32 %v646, %v650
    %v653 = vadd.f32 %v647, %v651
    %v654 = vmul.f32 %v622, -1.1791603e-07
    %v655 = vmul.f32 %v623, -1.1791603e-07
    %v656 = vmul.f32 %v620, 2.3547966e-05
    %v657 = vmul.f32 %v621, 2.3547966e-05
    %v658 = vadd.f32 %v656, 0.0010179626
    %v659 = vadd.f32 %v657, 0.0010179626
    %v660 = vadd.f32 %v654, %v658
    %v661 = vadd.f32 %v655, %v659
    %v662 = vmul.f32 %v660, %v624
    %v663 = vmul.f32 %v661, %v625
    %v664 = vadd.f32 %v662, %v652
    %v665 = vadd.f32 %v663, %v653
    %v666 = vmul.f32 %v618, %v640
    %v667 = vmul.f32 %v619, %v641
    %v668 = vrcp.pop %v664
    %v669 = vmul.f32 %v666, %v668
    %v670 = vrcp.pop %v665
    %v671 = vmul.f32 %v667, %v670
    %v672 = vadd.f32 %v669, 1.0
    %v673 = vadd.f32 %v671, 1.0
    %v674 = vmul.f32 %v612, %v672
    %v675 = vmul.f32 %v613, %v673
    %v676 = vpack.c.bf16 %v675, %v674
    %v677 = vld [vmem:[%s5] sm:$0xf]
    %v678 = vld [vmem:[%s5 + $0x4] sm:$0xf]
    %v679 = vld [vmem:[%s5 + $0x8] sm:$0xf]
    %v680 = vld [vmem:[%s5 + $0xc] sm:$0xf]
    %v681 = vld [vmem:[%s5 + $0x10] sm:$0xf]
    %v682 = vld [vmem:[%s5 + $0x14] sm:$0xf]
    %v683 = vld [vmem:[%s5 + $0x18] sm:$0xf]
    %v684 = vld [vmem:[%s5 + $0x1c] sm:$0xf]
    %v685 = vld [vmem:[%s5 + $0x20] sm:$0xf]
    %v686 = vld [vmem:[%s5 + $0x24] sm:$0xf]
    %v687 = vld [vmem:[%s5 + $0x28] sm:$0xf]
    %v688 = vld [vmem:[%s5 + $0x2c] sm:$0xf]
    %v689 = vld [vmem:[%s5 + $0x30] sm:$0xf]
    %v690 = vld [vmem:[%s5 + $0x34] sm:$0xf]
    %v691 = vld [vmem:[%s5 + $0x38] sm:$0xf]
    %v692 = vld [vmem:[%s5 + $0x3c] sm:$0xf]
    %v693 = vlaneseq
    %v694 = vshrl.u32 %v693, 7
    %v695 = vsub.s32 0, %v694
    %v696 = vrot.slane %v38, %v695
    %v713 = vunpack.c.l.b16 %v677
    %v714 = vunpack.c.l.b16 %v678
    %v715 = vunpack.c.l.b16 %v679
    %v716 = vunpack.c.l.b16 %v680
    %v717 = vunpack.c.l.b16 %v681
    %v718 = vunpack.c.l.b16 %v682
    %v719 = vunpack.c.l.b16 %v683
    %v720 = vunpack.c.l.b16 %v684
    %v721 = vunpack.c.l.b16 %v685
    %v722 = vunpack.c.l.b16 %v686
    %v723 = vunpack.c.l.b16 %v687
    %v724 = vunpack.c.l.b16 %v688
    %v725 = vunpack.c.l.b16 %v689
    %v726 = vunpack.c.l.b16 %v690
    %v727 = vunpack.c.l.b16 %v691
    %v728 = vunpack.c.l.b16 %v692
    %v729 = vpack.c.b16 %v714, %v713
    %v730 = vpack.c.b16 %v716, %v715
    %v731 = vpack.c.b16 %v718, %v717
    %v732 = vpack.c.b16 %v720, %v719
    %v733 = vpack.c.b16 %v722, %v721
    %v734 = vpack.c.b16 %v724, %v723
    %v735 = vpack.c.b16 %v726, %v725
    %v736 = vpack.c.b16 %v728, %v727
    %745 = vmatprep.subr.bf16.mxu0 0
    %746 = vmatpush1.bf16.msra.mxu0 %v729
    %747 = vmatprep.subr.bf16.mxu0 0
    %748 = vmatpush1.bf16.msra.mxu0 %v730
    %749 = vmatprep.subr.bf16.mxu0 0
    %750 = vmatpush1.bf16.msra.mxu0 %v731
    %751 = vmatprep.subr.bf16.mxu0 0
    %752 = vmatpush1.bf16.msra.mxu0 %v732
    %753 = vmatprep.subr.bf16.mxu0 0
    %754 = vmatpush1.bf16.msra.mxu0 %v733
    %755 = vmatprep.subr.bf16.mxu0 0
    %756 = vmatpush1.bf16.msra.mxu0 %v734
    %757 = vmatprep.subr.bf16.mxu0 0
    %758 = vmatpush1.bf16.msra.mxu0 %v735
    %759 = vmatprep.subr.bf16.mxu0 0
    %760 = vmatpush1.bf16.msra.mxu0 %v736
    %761 = vmatprep.subr.bf16.mxu0 0
    %762 = vmatpush1.bf16.msra.mxu0 0
    %763 = vmatprep.subr.bf16.mxu0 0
    %764 = vmatpush1.bf16.msra.mxu0 0
    %765 = vmatprep.subr.bf16.mxu0 0
    %766 = vmatpush1.bf16.msra.mxu0 0
    %767 = vmatprep.subr.bf16.mxu0 0
    %768 = vmatpush1.bf16.msra.mxu0 0
    %769 = vmatprep.subr.bf16.mxu0 0
    %770 = vmatpush1.bf16.msra.mxu0 0
    %771 = vmatprep.subr.bf16.mxu0 0
    %772 = vmatpush1.bf16.msra.mxu0 0
    %773 = vmatprep.subr.bf16.mxu0 0
    %774 = vmatpush1.bf16.msra.mxu0 0
    %775 = vmatprep.subr.bf16.mxu0 0
    %776 = vmatpush1.bf16.msra.mxu0 0
    %777 = vmatprep.mubr.bf16.mxu0 0
    %778 = vmatmul.mubr.bf16.gmra.mrb[0].mxu0 %v676
    %v779 = vpop.f32.mrb[0].mxu0
    %v780 = vadd.f32 %v696, %v779
    %v781 = vpop.f32.mrb[0].mxu0
    %v782 = vpop.f32.mrb[0].mxu0
    %v783 = vadd.f32 %v696, %v782
    %v784 = vpop.f32.mrb[0].mxu0
    %785 = vdwg.mxu0
    %v786 = vadd.f32 %v507, %v780
    %v787 = vadd.f32 %v508, %v783
    %788 = vst.msk [vmem:[#allocation2] sm:$0xff] %vm40, %v786
    %789 = vst.msk [vmem:[#allocation2 + $0x8] sm:$0xff] %vm40, %v787
    // Predicated region
    $region34: #{decoder_block_forward.1} parent=1 // pred_check
      _
    $region35: #{decoder_block_forward.1} parent=1 // pred_check_branch
      %791 = sbr.rel (0) target = $region37
    $region36: #{decoder_block_forward.1} parent=1 // pred_region
      %s793 = ssub.s32 256, 256
      %794 = vsyncadd [#allocation3], %s793
      %s795 = sshll.u32 [#allocation2], 4
      %s796 = int_to_ptr.vmem [resolvable:$true] %s795
      %801 = dma.vmem_to_hbm [thread:$0]  %s796, 256, %s8, [#allocation3], 128, 128, 8
    $region37: #{decoder_block_forward.1} parent=1 // pred_fallthru
      _
    // Predicated region
    $region38: #{decoder_block_forward.1} parent=1 // pred_check
      _
    $region39: #{decoder_block_forward.1} parent=1 // pred_check_branch
      %803 = sbr.rel (0) target = $region41
    $region40: #{decoder_block_forward.1} parent=1 // pred_region
      %804 = dma.done [#allocation3], 256
    $region41: #{decoder_block_forward.1} parent=1 // pred_fallthru
      _
    %805 = vsyncpa [#allocation3], 1

</llo_original>
